<compile_context>
chip_gen: v5e
topology: v5e:2x2
jax: 0.10.0
libtpu: 0.0.40
codegen_flags: <defaults>
</compile_context>

<pallas_src>
import jax
import jax.numpy as jnp
from jax.experimental import pallas as pl
from jax.experimental.pallas import tpu as pltpu


def _choose_tile_h(h, p, c, w, itemsize, budget_bytes=2 * 1024 * 1024):
    """Largest h-tile (multiple of p; multiple of 8*p when tiling) within budget."""
    if c * h * w * itemsize <= budget_bytes:
        return h
    step = 8 * p                      # keeps TILE_H and TILE_H//p 8-aligned
    cands = [t for t in range(step, h, step) if h % t == 0]
    fitting = [t for t in cands if c * t * w * itemsize <= budget_bytes]
    if fitting:
        return max(fitting)
    if cands:
        return min(cands)
    return h                          # no clean divisor; fall back to full rows


def l_exp_pallas(x, patch_size, mean_val):
    """Pallas implementation of L_exp(patch_size, mean_val).forward(x) -> scalar."""
    p = int(patch_size)
    b, c, h, w = x.shape
    nph, npw = h // p, w // p
    assert nph >= 1 and npw >= 1, "patch_size larger than the image"
    # AvgPool2d(patch_size) floor mode: drop incomplete border patches.
    hc, wc = nph * p, npw * p
    if (hc, wc) != (h, w):
        x = x[:, :, :hc, :wc]
        h, w = hc, wc

    th = _choose_tile_h(h, p, c, w, x.dtype.itemsize)
    n_th = h // th
    tph = th // p                     # pooled rows produced per h-tile

    # Constant 0/1 pooling matrices, passed as kernel inputs (not captured).
    pool_rows = (jnp.arange(tph)[:, None] == (jnp.arange(th)[None, :] // p)
                 ).astype(jnp.float32)                        # (tph, th)
    pool_cols = ((jnp.arange(w)[:, None] // p) == jnp.arange(npw)[None, :]
                 ).astype(jnp.float32)                        # (w, npw)

    inv = 1.0 / (float(c) * float(p) * float(p))              # channel + pool means
    mv = float(mean_val)

    def kernel(a_ref, bmat_ref, x_ref, o_ref):
        # x_ref: (1, c, th, w) in native dtype; cast in-register (no HBM upcast).
        xs = jnp.sum(x_ref[0].astype(jnp.float32), axis=0)    # (th, w) channel sum
        pooled = jnp.dot(a_ref[...], xs,
                         preferred_element_type=jnp.float32)  # (tph, w)
        pooled = jnp.dot(pooled, bmat_ref[...],
                         preferred_element_type=jnp.float32)  # (tph, npw)
        m = pooled * inv                                      # pooled mean of channel mean
        t1 = jnp.clip(m, 0.0, 0.55)
        t2 = jnp.clip(m, 0.55, 1.0)
        o_ref[0, :, :] = (t1 - mv) ** 2 + (t2 - mv) ** 2

    contrib = pl.pallas_call(
        kernel,
        out_shape=jax.ShapeDtypeStruct((b, nph, npw), jnp.float32),
        grid=(b, n_th),
        in_specs=[
            pl.BlockSpec((tph, th), lambda i, j: (0, 0)),          # pooling rows
            pl.BlockSpec((w, npw), lambda i, j: (0, 0)),           # pooling cols
            pl.BlockSpec((1, c, th, w), lambda i, j: (i, 0, j, 0)),
        ],
        out_specs=pl.BlockSpec((1, tph, npw), lambda i, j: (i, j, 0)),
        compiler_params=pltpu.CompilerParams(
            dimension_semantics=("parallel", "parallel"),
            vmem_limit_bytes=32 * 1024 * 1024,
        ),
    )(pool_rows, pool_cols, x)

    # d1 + d2 == mean over all pooled cells of the summed contributions
    # (both torch means run over the same b*nph*npw elements).
    return jnp.sum(contrib) / jnp.float32(b * nph * npw)


def l_exp_ref(x, patch_size, mean_val):
    """Pure-JAX reference matching the PyTorch forward exactly."""
    p = int(patch_size)
    b, c, h, w = x.shape
    nph, npw = h // p, w // p
    xm = jnp.mean(x.astype(jnp.float32), axis=1, keepdims=True)    # (b,1,h,w)
    xm = xm[:, :, : nph * p, : npw * p]
    pooled = xm.reshape(b, 1, nph, p, npw, p).mean(axis=(3, 5))    # (b,1,nph,npw)
    t1 = jnp.clip(pooled, 0.0, 0.55)
    t2 = jnp.clip(pooled, 0.55, 1.0)
    d1 = jnp.mean((t1 - mean_val) ** 2)
    d2 = jnp.mean((t2 - mean_val) ** 2)
    return d1 + d2


if __name__ == "__main__":
    key = jax.random.PRNGKey(0)
    k1, k2 = jax.random.split(key)

    # Test 1: spatial dims divisible by the patch size.
    x1 = jax.random.uniform(k1, (2, 4, 16, 16), dtype=jnp.float32)
    got1 = jax.block_until_ready(l_exp_pallas(x1, patch_size=8, mean_val=0.6))
    want1 = jax.block_until_ready(l_exp_ref(x1, patch_size=8, mean_val=0.6))
    assert jnp.allclose(got1, want1, atol=1e-5, rtol=1e-5), (got1, want1)

    # Test 2: ragged spatial dims (AvgPool2d floor behavior crops the border).
    x2 = jax.random.uniform(k2, (2, 3, 40, 32), dtype=jnp.float32)
    got2 = jax.block_until_ready(l_exp_pallas(x2, patch_size=16, mean_val=0.5))
    want2 = jax.block_until_ready(l_exp_ref(x2, patch_size=16, mean_val=0.5))
    assert jnp.allclose(got2, want2, atol=1e-5, rtol=1e-5), (got2, want2)

    print("KERNEL_OK")
</pallas_src>

<mosaic_0001>
module attributes {stable_mosaic.version = 11 : i64} {
  func.func @kernel(%arg0: i32, %arg1: i32, %arg2: memref<2x16xf32, #tpu.memory_space<vmem>>, %arg3: memref<16x2xf32, #tpu.memory_space<vmem>>, %arg4: memref<1x4x16x16xf32, #tpu.memory_space<vmem>>, %arg5: memref<1x2x2xf32, #tpu.memory_space<vmem>>) attributes {dimension_semantics = [#tpu.dimension_semantics<parallel>, #tpu.dimension_semantics<parallel>], iteration_bounds = array<i64: 2, 1>, scalar_prefetch = 0 : i64, scratch_operands = 0 : i64, tpu.core_type = #tpu.core_type<tc>, window_params = [{pipeline_mode = #tpu.pipeline_mode<synchronous>, transform_indices = @transform_0, window_bounds = array<i64: 2, 16>}, {pipeline_mode = #tpu.pipeline_mode<synchronous>, transform_indices = @transform_1, window_bounds = array<i64: 16, 2>}, {transform_indices = @transform_2, window_bounds = array<i64: 1, 4, 16, 16>}, {transform_indices = @transform_3, window_bounds = array<i64: 1, 2, 2>}]} {
    %c0 = arith.constant 0 : index
    %c0_0 = arith.constant 0 : index
    %c0_1 = arith.constant 0 : index
    %c0_2 = arith.constant 0 : index
    %0 = vector.load %arg4[%c0, %c0_0, %c0_1, %c0_2] : memref<1x4x16x16xf32, #tpu.memory_space<vmem>>, vector<1x4x16x16xf32>
    %1 = vector.shape_cast %0 : vector<1x4x16x16xf32> to vector<4x16x16xf32>
    %cst = arith.constant dense<0.000000e+00> : vector<16x16xf32>
    %2 = vector.multi_reduction <add>, %1, %cst [0] : vector<4x16x16xf32> to vector<16x16xf32>
    %c0_3 = arith.constant 0 : index
    %c0_4 = arith.constant 0 : index
    %3 = vector.load %arg2[%c0_3, %c0_4] : memref<2x16xf32, #tpu.memory_space<vmem>>, vector<2x16xf32>
    %cst_5 = arith.constant dense<0.000000e+00> : vector<2x16xf32>
    %4 = tpu.matmul %3, %2, %cst_5 {dimension_numbers = #tpu.dot_dimension_numbers<[1], [0], [0], [1], [0, 0, 1, 1], [], []>} : vector<2x16xf32>, vector<16x16xf32>, vector<2x16xf32> -> vector<2x16xf32>
    %c0_6 = arith.constant 0 : index
    %c0_7 = arith.constant 0 : index
    %5 = vector.load %arg3[%c0_6, %c0_7] : memref<16x2xf32, #tpu.memory_space<vmem>>, vector<16x2xf32>
    %cst_8 = arith.constant dense<0.000000e+00> : vector<2x2xf32>
    %6 = tpu.matmul %4, %5, %cst_8 {dimension_numbers = #tpu.dot_dimension_numbers<[1], [0], [0], [1], [0, 0, 1, 1], [], []>} : vector<2x16xf32>, vector<16x2xf32>, vector<2x2xf32> -> vector<2x2xf32>
    %cst_9 = arith.constant 3.906250e-03 : f32
    %7 = vector.broadcast %cst_9 : f32 to vector<2x2xf32>
    %8 = arith.mulf %6, %7 : vector<2x2xf32>
    %cst_10 = arith.constant 0.000000e+00 : f32
    %cst_11 = arith.constant 5.500000e-01 : f32
    %9 = vector.broadcast %cst_10 : f32 to vector<2x2xf32>
    %10 = arith.maximumf %9, %8 : vector<2x2xf32>
    %11 = vector.broadcast %cst_11 : f32 to vector<2x2xf32>
    %12 = arith.minimumf %11, %10 : vector<2x2xf32>
    %cst_12 = arith.constant 5.500000e-01 : f32
    %cst_13 = arith.constant 1.000000e+00 : f32
    %13 = vector.broadcast %cst_12 : f32 to vector<2x2xf32>
    %14 = arith.maximumf %13, %8 : vector<2x2xf32>
    %15 = vector.broadcast %cst_13 : f32 to vector<2x2xf32>
    %16 = arith.minimumf %15, %14 : vector<2x2xf32>
    %cst_14 = arith.constant 6.000000e-01 : f32
    %17 = vector.broadcast %cst_14 : f32 to vector<2x2xf32>
    %18 = arith.subf %12, %17 : vector<2x2xf32>
    %19 = arith.mulf %18, %18 : vector<2x2xf32>
    %cst_15 = arith.constant 6.000000e-01 : f32
    %20 = vector.broadcast %cst_15 : f32 to vector<2x2xf32>
    %21 = arith.subf %16, %20 : vector<2x2xf32>
    %22 = arith.mulf %21, %21 : vector<2x2xf32>
    %23 = arith.addf %19, %22 : vector<2x2xf32>
    %c0_16 = arith.constant 0 : index
    %c0_17 = arith.constant 0 : index
    %c0_18 = arith.constant 0 : index
    %24 = vector.load %arg5[%c0_16, %c0_17, %c0_18] : memref<1x2x2xf32, #tpu.memory_space<vmem>>, vector<1x2x2xf32>
    %25 = vector.shape_cast %24 : vector<1x2x2xf32> to vector<2x2xf32>
    %26 = vector.shape_cast %23 : vector<2x2xf32> to vector<1x2x2xf32>
    tpu.vector_store %arg5[%c0_16, %c0_17, %c0_18], %26 {strides = array<i32>} : memref<1x2x2xf32, #tpu.memory_space<vmem>>, vector<1x2x2xf32>,
    return
  }
  func.func @transform_0(%arg0: i32, %arg1: i32) -> (i32, i32) {
    %c0_i32 = arith.constant 0 : i32
    %c0_i32_0 = arith.constant 0 : i32
    %c0_i32_1 = arith.constant 0 : i32
    return %c0_i32, %c0_i32_0 : i32, i32
  }
  func.func @transform_1(%arg0: i32, %arg1: i32) -> (i32, i32) {
    %c0_i32 = arith.constant 0 : i32
    %c0_i32_0 = arith.constant 0 : i32
    %c0_i32_1 = arith.constant 0 : i32
    return %c0_i32, %c0_i32_0 : i32, i32
  }
  func.func @transform_2(%arg0: i32, %arg1: i32) -> (i32, i32, i32, i32) {
    %c0_i32 = arith.constant 0 : i32
    %c0_i32_0 = arith.constant 0 : i32
    %c0_i32_1 = arith.constant 0 : i32
    return %arg0, %c0_i32, %arg1, %c0_i32_0 : i32, i32, i32, i32
  }
  func.func @transform_3(%arg0: i32, %arg1: i32) -> (i32, i32, i32) {
    %c0_i32 = arith.constant 0 : i32
    %c0_i32_0 = arith.constant 0 : i32
    return %arg0, %arg1, %c0_i32 : i32, i32, i32
  }
}

</mosaic_0001>

<llo_original>
// kernel: tpu_custom_call.1
$region0: #{tpu_custom_call.1}
  #allocation0 [shape = 'u32[]', space=smem, size = 0x4, offset = 0x4, fixed_abs, tag = 'smem constant byte address 0x4 - core index']
  #allocation1 [shape = 'u32[72,128]{1,0:T(1,128)}', space=vmem, size = 0x9000, scoped, tag = 'internal scratch']
  %s0 = inlined_call_operand.vmem [shape: f32[2,16], index: 0, kind: input, shape index: {}]
  %s1 = inlined_call_operand.vmem [shape: f32[16,2], index: 1, kind: input, shape index: {}]
  %s2 = inlined_call_operand.hbm [shape: f32[2,4,16,16], index: 2, kind: input, shape index: {}]
  %s3 = inlined_call_operand.hbm [shape: f32[2,2,2], index: 3, kind: output, shape index: {}]
  %s4 = sld [smem:[#allocation0]]
  $region49: #{tpu_custom_call.1} parent=0
    _
  %s6 = ssub.s32 1, %s4
  %s7 = scalar_select 0, %s6, %s4
  $region1: #{tpu_custom_call.1} parent=0
    #allocation2 [shape = 'u8[65536]{0}', space=vmem, size = 0x10000, scoped, tag = 'input window, operand 2']
    #allocation3 [shape = 's32[2]{0}', space=sflag, size = 0x8, scoped, tag = 'scoped memory for tpu_custom_call.1']
    #allocation4 [shape = 's32[2]{0}', space=sflag, size = 0x8, scoped, tag = 'scoped memory for tpu_custom_call.1']
    #allocation5 [shape = 'u8[2048]{0}', space=vmem, size = 0x800, scoped, tag = 'output window, operand 0']
    %8 = vsyncpa [#allocation3], 0
    %s9 = scalar_lea.sflag [#allocation3], 1
    %10 = vsyncpa %s9, 0
    %11 = vsyncpa [#allocation4], 0
    %s12 = scalar_lea.sflag [#allocation4], 1
    %13 = vsyncpa %s12, 0
    loop: start=0, step=1, limit=4
    $region2: #{tpu_custom_call.1} parent=1 // loop_pre_header
      _
    $region3: #{tpu_custom_call.1} parent=1 // loop_header
      %s15 = sphi 0, %s19
      %p16 = scmp.ge.s32.totalorder %s15, 4
      %s22 = sphi 0, %s34
      %s23 = sphi 0, %s30
      %s24 = sphi 0, %s22
      %s25 = sphi 0, %s23
      %s26 = sphi 0, %s24
      %s27 = sphi 0, %s25
      %s35 = sphi 0, %s35
      %s37 = sphi 0, %s35
      %s38 = sphi 0, %s37
      %s52 = sphi 0, %s38
      %s56 = sphi 0, %s56
      %s58 = sphi 0, %s56
      %s59 = sphi 0, %s58
      %s73 = sphi 0, %s59
      %s81 = sphi 0, %s83
      %s84 = sphi 0, %s81
      %s85 = sphi 0, %s84
      %s101 = sphi 0, %s85
      %s109 = sphi 0, %s111
      %s112 = sphi 0, %s109
      %s113 = sphi 0, %s112
      %s129 = sphi 0, %s113
    $region4: #{tpu_custom_call.1} parent=1 // loop_header_branch
      %18 = sbr.rel (%p16) target = $region8
    $region5: #{tpu_custom_call.1} parent=1 // loop_body
      %s20 = ssub.s32 %s15, 1
      %s21 = ssub.s32 %s15, 2
      %s28 = sadd.s32 1, %s23
      %p29 = scmp.ge.s32.totalorder %s28, 1
      %s30 = scalar_select %p29, 0, %s28
      %s31 = sadd.s32 1, %s22
      %s32 = scalar_select %p29, %s31, %s22
      %p33 = scmp.ge.s32.totalorder %s32, 2
      %s34 = scalar_select %p33, 0, %s32
      %s36 = sadd.s32 %s35, 1
      %p39 = scmp.eq.s32.totalorder %s15, 1
      %p40 = scmp.ne.s32.totalorder %s35, %s37
      %p41 = scmp.eq.s32.totalorder %s15, 0
      %p42 = por %p40, %p41
      %p43 = scmp.ne.s32.totalorder %s35, %s37
      %p44 = scmp.eq.s32.totalorder %s20, 1
      %p45 = por %p43, %p44
      %p46 = scmp.ne.s32.totalorder %s37, %s38
      %p47 = scmp.eq.s32.totalorder %s20, 0
      %p48 = por %p46, %p47
      %p49 = scmp.ne.s32.totalorder %s37, %s38
      %p50 = scmp.eq.s32.totalorder %s21, 1
      %p51 = por %p49, %p50
      %p53 = scmp.ne.s32.totalorder %s38, %s52
      %p54 = scmp.eq.s32.totalorder %s21, 0
      %p55 = por %p53, %p54
      %s57 = sadd.s32 %s56, 1
      %p60 = scmp.eq.s32.totalorder %s15, 1
      %p61 = scmp.ne.s32.totalorder %s56, %s58
      %p62 = scmp.eq.s32.totalorder %s15, 0
      %p63 = por %p61, %p62
      %p64 = scmp.ne.s32.totalorder %s56, %s58
      %p65 = scmp.eq.s32.totalorder %s20, 1
      %p66 = por %p64, %p65
      %p67 = scmp.ne.s32.totalorder %s58, %s59
      %p68 = scmp.eq.s32.totalorder %s20, 0
      %p69 = por %p67, %p68
      %p70 = scmp.ne.s32.totalorder %s58, %s59
      %p71 = scmp.eq.s32.totalorder %s21, 1
      %p72 = por %p70, %p71
      %p74 = scmp.ne.s32.totalorder %s59, %s73
      %p75 = scmp.eq.s32.totalorder %s21, 0
      %p76 = por %p74, %p75
      %s77 = ssub.s32 %s22, %s34
      %s78 = ssub.s32 %s23, %s30
      %s79 = sor.u32 %s77, %s78
      %p80 = scmp.eq.s32.totalorder %s79, 0
      %s82 = sadd.s32 %s81, 1
      %s83 = scalar_select %p80, %s81, %s82
      %p86 = pneg %p80
      %p87 = scmp.eq.s32.totalorder %s15, 1
      %p88 = por %p86, %p87
      %p89 = scmp.ne.s32.totalorder %s81, %s84
      %p90 = scmp.eq.s32.totalorder %s15, 0
      %p91 = por %p89, %p90
      %p92 = scmp.ne.s32.totalorder %s81, %s84
      %p93 = scmp.eq.s32.totalorder %s20, 1
      %p94 = por %p92, %p93
      %p95 = scmp.ne.s32.totalorder %s84, %s85
      %p96 = scmp.eq.s32.totalorder %s20, 0
      %p97 = por %p95, %p96
      %p98 = scmp.ne.s32.totalorder %s84, %s85
      %p99 = scmp.eq.s32.totalorder %s21, 1
      %p100 = por %p98, %p99
      %p102 = scmp.ne.s32.totalorder %s85, %s101
      %p103 = scmp.eq.s32.totalorder %s21, 0
      %p104 = por %p102, %p103
      %s105 = ssub.s32 %s22, %s34
      %s106 = ssub.s32 %s23, %s30
      %s107 = sor.u32 %s105, %s106
      %p108 = scmp.eq.s32.totalorder %s107, 0
      %s110 = sadd.s32 %s109, 1
      %s111 = scalar_select %p108, %s109, %s110
      %p114 = pneg %p108
      %p115 = scmp.eq.s32.totalorder %s15, 1
      %p116 = por %p114, %p115
      %p117 = scmp.ne.s32.totalorder %s109, %s112
      %p118 = scmp.eq.s32.totalorder %s15, 0
      %p119 = por %p117, %p118
      %p120 = scmp.ne.s32.totalorder %s109, %s112
      %p121 = scmp.eq.s32.totalorder %s20, 1
      %p122 = por %p120, %p121
      %p123 = scmp.ne.s32.totalorder %s112, %s113
      %p124 = scmp.eq.s32.totalorder %s20, 0
      %p125 = por %p123, %p124
      %p126 = scmp.ne.s32.totalorder %s112, %s113
      %p127 = scmp.eq.s32.totalorder %s21, 1
      %p128 = por %p126, %p127
      %p130 = scmp.ne.s32.totalorder %s113, %s129
      %p131 = scmp.eq.s32.totalorder %s21, 0
      %p132 = por %p130, %p131
      %p133 = scmp.le.s32.totalorder 1, %s15
      %p134 = scmp.lt.s32.totalorder %s15, 3
      %p135 = pnand %p133, %p134
      %p136 = pneg %p135
      // Predicated region
      $region9: #{tpu_custom_call.1} parent=5 // pred_check
        _
      $region10: #{tpu_custom_call.1} parent=5 // pred_check_branch
        %138 = sbr.rel (%p135) target = $region12
      $region11: #{tpu_custom_call.1} parent=5 // pred_region
        %s139 = ssub.s32 %s15, 1
        // Predicated region
        $region13: #{tpu_custom_call.1} parent=11 // pred_check
          %p140 = pneg %p48
        $region14: #{tpu_custom_call.1} parent=11 // pred_check_branch
          %142 = sbr.rel (%p140) target = $region16
        $region15: #{tpu_custom_call.1} parent=11 // pred_region
          _
        $region16: #{tpu_custom_call.1} parent=11 // pred_fallthru
          _
        // Predicated region
        $region17: #{tpu_custom_call.1} parent=11 // pred_check
          %p143 = pneg %p69
        $region18: #{tpu_custom_call.1} parent=11 // pred_check_branch
          %145 = sbr.rel (%p143) target = $region20
        $region19: #{tpu_custom_call.1} parent=11 // pred_region
          _
        $region20: #{tpu_custom_call.1} parent=11 // pred_fallthru
          _
      $region12: #{tpu_custom_call.1} parent=5 // pred_fallthru
        _
      %p146 = scmp.lt.s32.totalorder %s15, 2
      // Predicated region
      $region21: #{tpu_custom_call.1} parent=5 // pred_check
        %p147 = pneg %p146
      $region22: #{tpu_custom_call.1} parent=5 // pred_check_branch
        %149 = sbr.rel (%p147) target = $region24
      $region23: #{tpu_custom_call.1} parent=5 // pred_region
        // Predicated region
        $region25: #{tpu_custom_call.1} parent=23 // pred_check
          %p150 = pneg %p91
        $region26: #{tpu_custom_call.1} parent=23 // pred_check_branch
          %152 = sbr.rel (%p150) target = $region28
        $region27: #{tpu_custom_call.1} parent=23 // pred_region
          %s153 = sand.u32 %s81, 1
          %s154 = scalar_lea.sflag [#allocation3], %s153
          %s155 = sand.u32 %s81, 1
          %s156 = smul.addr %s155, 64
          %s157 = scalar_lea.vmem [#allocation2], %s156
          %s158 = smul.u32 2, %s23
          %160 = vsyncadd %s154, 0
          %s161 = smul.addr %s22, 8
          %s162 = sadd.s32 %s158, %s161
          %s163 = smul.addr %s162, 8
          %s164 = scalar_lea.hbm %s2, %s163
          %s165 = sshll.u32 %s164, 4
          %s166 = int_to_ptr.hbm [resolvable:$true] %s165
          %s167 = sshll.u32 %s157, 4
          %s168 = int_to_ptr.vmem [resolvable:$true] %s167
          %173 = dma.hbm_to_vmem [thread:$0]  %s166, 1024, %s168, %s154, 128, 128, 8
        $region28: #{tpu_custom_call.1} parent=23 // pred_fallthru
          _
      $region24: #{tpu_custom_call.1} parent=5 // pred_fallthru
        _
      %p174 = scmp.le.s32.totalorder 1, %s15
      %p175 = scmp.lt.s32.totalorder %s15, 3
      %p176 = pnand %p174, %p175
      %p177 = pneg %p176
      // Predicated region
      $region29: #{tpu_custom_call.1} parent=5 // pred_check
        _
      $region30: #{tpu_custom_call.1} parent=5 // pred_check_branch
        %179 = sbr.rel (%p176) target = $region32
      $region31: #{tpu_custom_call.1} parent=5 // pred_region
        %s180 = ssub.s32 %s15, 1
        %s181 = sand.u32 %s84, 1
        %s182 = scalar_lea.sflag [#allocation3], %s181
        %s183 = sand.u32 %s84, 1
        %s184 = smul.addr %s183, 64
        %s185 = scalar_lea.vmem [#allocation2], %s184
        // Predicated region
        $region33: #{tpu_custom_call.1} parent=31 // pred_check
          %p186 = pneg %p97
        $region34: #{tpu_custom_call.1} parent=31 // pred_check_branch
          %188 = sbr.rel (%p186) target = $region36
        $region35: #{tpu_custom_call.1} parent=31 // pred_region
          %190 = dma.done %s182, 1024
        $region36: #{tpu_custom_call.1} parent=31 // pred_fallthru
          _
        %p191 = pneg %p48
        %p192 = pneg %p45
        %p193 = pneg %p69
        %p194 = pneg %p66
        %s195 = sand.u32 %s84, 1
        %s196 = scalar_lea.sflag [#allocation3], %s195
        %s197 = sand.u32 %s84, 1
        %s198 = smul.addr %s197, 64
        %s199 = scalar_lea.vmem [#allocation2], %s198
        %p200 = pneg %p97
        %p201 = pneg %p94
        %p202 = pneg %p125
        %p203 = pneg %p122
        %s204 = sand.u32 %s112, 1
        %s205 = scalar_lea.sflag [#allocation4], %s204
        %s206 = sand.u32 %s112, 1
        %s207 = smul.addr %s206, 2
        %s208 = scalar_lea.vmem [#allocation5], %s207
        %s209 = smul.u32 2, %s25
        %v210 = vld [vmem:[%s185] sm:$0xff]
        %v211 = vld [vmem:[%s185 + $0x8] sm:$0xff]
        %v212 = vld [vmem:[%s185 + $0x10] sm:$0xff]
        %v213 = vld [vmem:[%s185 + $0x18] sm:$0xff]
        %v214 = vld [vmem:[%s185 + $0x20] sm:$0xff]
        %v215 = vld [vmem:[%s185 + $0x28] sm:$0xff]
        %v216 = vld [vmem:[%s185 + $0x30] sm:$0xff]
        %v217 = vld [vmem:[%s185 + $0x38] sm:$0xff]
        %vm218 = vcmask 130048
        %v219 = vsel %vm218, %v210, 0.0
        %v220 = vsel %vm218, %v212, 0.0
        %v221 = vadd.f32 %v219, %v220
        %v222 = vsel %vm218, %v214, 0.0
        %v223 = vadd.f32 %v221, %v222
        %v224 = vsel %vm218, %v216, 0.0
        %v225 = vadd.f32 %v223, %v224
        %v226 = vsel %vm218, %v211, 0.0
        %v227 = vsel %vm218, %v213, 0.0
        %v228 = vadd.f32 %v226, %v227
        %v229 = vsel %vm218, %v215, 0.0
        %v230 = vadd.f32 %v228, %v229
        %v231 = vsel %vm218, %v217, 0.0
        %v232 = vadd.f32 %v230, %v231
        %v233 = vld [vmem:[%s0] sm:$0x3]
        %v235 = vsel %vm218, %v233, 0
        %237 = vmatpush.msra.mxu0 0.0
        %238 = vmatpush.msra.mxu0 0.0
        %239 = vmatpush.msra.mxu0 0.0
        %240 = vmatpush.msra.mxu0 0.0
        %241 = vmatpush.msra.mxu0 0.0
        %242 = vmatpush.msra.mxu0 0.0
        %243 = vmatpush.msra.mxu0 0.0
        %244 = vmatpush.msra.mxu0 0.0
        %245 = vmatpush.msra.mxu0 0.0
        %246 = vmatpush.msra.mxu0 0.0
        %247 = vmatpush.msra.mxu0 0.0
        %248 = vmatpush.msra.mxu0 0.0
        %249 = vmatpush.msra.mxu0 0.0
        %250 = vmatpush.msra.mxu0 0.0
        %251 = vmatpush.msra.mxu0 %v232
        %252 = vmatpush.msra.mxu0 %v225
        %253 = vmatmul.f32.gmra.mxu0 %v235
        %v254 = vpop.f32.mrf.mxu0
        %v255 = vadd.f32 0.0, %v254
        %256 = vdwg.mxu0
        %v257 = vld [vmem:[%s1] sm:$0xff]
        %v258 = vld [vmem:[%s1 + $0x8] sm:$0xff]
        %v260 = vsel %vm218, %v255, 0
        %262 = vmatpush.msra.mxu0 0.0
        %263 = vmatpush.msra.mxu0 0.0
        %264 = vmatpush.msra.mxu0 0.0
        %265 = vmatpush.msra.mxu0 0.0
        %266 = vmatpush.msra.mxu0 0.0
        %267 = vmatpush.msra.mxu0 0.0
        %268 = vmatpush.msra.mxu0 0.0
        %269 = vmatpush.msra.mxu0 0.0
        %270 = vmatpush.msra.mxu0 0.0
        %271 = vmatpush.msra.mxu0 0.0
        %272 = vmatpush.msra.mxu0 0.0
        %273 = vmatpush.msra.mxu0 0.0
        %274 = vmatpush.msra.mxu0 0.0
        %275 = vmatpush.msra.mxu0 0.0
        %276 = vmatpush.msra.mxu0 %v258
        %277 = vmatpush.msra.mxu0 %v257
        %278 = vmatmul.f32.gmra.mxu0 %v260
        %v279 = vpop.f32.mrf.mxu0
        %v280 = vadd.f32 0.0, %v279
        %281 = vdwg.mxu0
        %v282 = vmul.f32 %v280, 0.00390625
        %v283 = vmax.f32 %v282, 0.0
        %v284 = vmin.f32 %v283, 0.55
        %v285 = vmax.f32 %v282, 0.55
        %v286 = vmin.f32 %v285, 1.0
        %v287 = vsub.f32 %v284, 0.6
        %v288 = vmul.f32 %v287, %v287
        %v289 = vsub.f32 %v286, 0.6
        %v290 = vmul.f32 %v289, %v289
        %v291 = vadd.f32 %v288, %v290
        %vm292 = vcmask 9216
        %293 = vst.msk [vmem:[%s208] sm:$0x3] %vm292, %v291
        %s294 = sand.u32 %s112, 1
        %s295 = scalar_lea.sflag [#allocation4], %s294
        %s296 = sand.u32 %s112, 1
        %s297 = smul.addr %s296, 2
        %s298 = scalar_lea.vmem [#allocation5], %s297
        // Predicated region
        $region37: #{tpu_custom_call.1} parent=31 // pred_check
          %p299 = pneg %p122
        $region38: #{tpu_custom_call.1} parent=31 // pred_check_branch
          %301 = sbr.rel (%p299) target = $region40
        $region39: #{tpu_custom_call.1} parent=31 // pred_region
          %303 = vsyncadd %s295, 0
          %s304 = sadd.s32 %s25, %s24
          %s305 = smul.addr %s304, 2
          %s306 = scalar_lea.hbm %s3, %s305
          %s308 = sshll.u32 %s298, 4
          %s309 = int_to_ptr.vmem [resolvable:$true] %s308
          %s310 = sshll.u32 %s306, 4
          %s311 = int_to_ptr.hbm [resolvable:$true] %s310
          %313 = dma.vmem_to_hbm [thread:$0]  %s309, 32, %s311, %s295
        $region40: #{tpu_custom_call.1} parent=31 // pred_fallthru
          _
      $region32: #{tpu_custom_call.1} parent=5 // pred_fallthru
        _
      %p314 = scmp.le.s32.totalorder 2, %s15
      // Predicated region
      $region41: #{tpu_custom_call.1} parent=5 // pred_check
        %p315 = pneg %p314
      $region42: #{tpu_custom_call.1} parent=5 // pred_check_branch
        %317 = sbr.rel (%p315) target = $region44
      $region43: #{tpu_custom_call.1} parent=5 // pred_region
        %s318 = ssub.s32 %s15, 2
        // Predicated region
        $region45: #{tpu_custom_call.1} parent=43 // pred_check
          %p319 = pneg %p128
        $region46: #{tpu_custom_call.1} parent=43 // pred_check_branch
          %321 = sbr.rel (%p319) target = $region48
        $region47: #{tpu_custom_call.1} parent=43 // pred_region
          %s322 = sand.u32 %s113, 1
          %s323 = scalar_lea.sflag [#allocation4], %s322
          %s324 = sand.u32 %s113, 1
          %s325 = smul.addr %s324, 2
          %s326 = scalar_lea.vmem [#allocation5], %s325
          %328 = dma.done %s323, 32
        $region48: #{tpu_custom_call.1} parent=43 // pred_fallthru
          _
      $region44: #{tpu_custom_call.1} parent=5 // pred_fallthru
        _
    $region6: #{tpu_custom_call.1} parent=1 // loop_footer
      %s19 = sadd.s32 1, %s15
    $region7: #{tpu_custom_call.1} parent=1 // loop_footer_branch
      %14 = sbr.rel target = $region3
    $region8: #{tpu_custom_call.1} parent=1 // loop_exit
      _
    %329 = vsyncpa [#allocation3], 1
    %s330 = scalar_lea.sflag [#allocation3], 1
    %331 = vsyncpa %s330, 1
    %332 = vsyncpa [#allocation4], 1
    %s333 = scalar_lea.sflag [#allocation4], 1
    %334 = vsyncpa %s333, 1

</llo_original>
